<compile_context>
chip_gen: v7x
topology: tpu7x:2x2x1
jax: 0.10.0
libtpu: 0.0.40
codegen_flags: <defaults>
</compile_context>

<pallas_src>
import jax
import jax.numpy as jnp
from jax.experimental import pallas as pl
from jax.experimental.pallas import tpu as pltpu


def _round_up(x, m):
    return (x + m - 1) // m * m


def _mlp_kernel(x_ref,
                w1_ref, b1_ref,
                w2_ref, b2_ref,
                w3_ref, b3_ref,
                w4_ref, b4_ref,
                o_ref):
    # x_ref: (TB, 784) f32 batch tile; weights (in, out) bf16; biases (1, out) f32.
    # Cast to bf16 in VMEM (saves a separate HBM read+write pass vs a wrapper
    # astype); all dots accumulate in f32, all elementwise work stays f32.
    x = x_ref[...].astype(jnp.bfloat16)
    h = jnp.dot(x, w1_ref[...], preferred_element_type=jnp.float32)
    h = jnp.maximum(h + b1_ref[...], 0.0)                        # Linear(784,128)+ReLU
    h = jnp.dot(h.astype(jnp.bfloat16), w2_ref[...],
                preferred_element_type=jnp.float32)
    h = jnp.maximum(h + b2_ref[...], 0.0)                        # Linear(128,64)+ReLU
    h = jnp.dot(h.astype(jnp.bfloat16), w3_ref[...],
                preferred_element_type=jnp.float32)
    h = jnp.maximum(h + b3_ref[...], 0.0)                        # Linear(64,16)+ReLU
    h = jnp.dot(h.astype(jnp.bfloat16), w4_ref[...],
                preferred_element_type=jnp.float32)
    o_ref[...] = (h + b4_ref[...]).astype(o_ref.dtype)           # Linear(16,10), no ReLU


def _pick_batch_tile(B, block_b):
    """Batch-tile size: multiple of 8 sublanes, clamped for small batches,
    capped on large batches so v7x's two TensorCores each get >= 4 tiles."""
    tb = min(block_b, _round_up(B, 8))
    if B >= 8 * 256:
        # v7x megacore guard: keep at least ~8 grid tiles (4 per core after the
        # "parallel" split). No-op on single-TC v5e/v6e and for small batches.
        tb = min(tb, _round_up(-(-B // 8), 256))
    return max(8, _round_up(tb, 8))


def dnn_forward(x, params, *, block_b=1024):
    """x: (B, C, H, W) float32 with C*H*W == 784. Returns (B, 10) float32."""
    B = x.shape[0]
    x_flat = x.reshape(B, -1)                                    # nn.Flatten()
    assert x_flat.shape[1] == 784
    # NOTE: no astype / pad of x here -- the bf16 cast happens inside the
    # kernel and the ragged last tile is handled by a non-divisible grid.

    (w1, b1), (w2, b2), (w3, b3), (w4, b4) = params
    # Weights in bf16 (MXU-native, halves resident weight bytes); biases stay
    # f32 (added to the f32 accumulator on the VPU).
    w1, w2, w3, w4 = (w.astype(jnp.bfloat16) for w in (w1, w2, w3, w4))

    TB = _pick_batch_tile(B, block_b)
    grid = (pl.cdiv(B, TB),)                                     # ragged last tile OK

    def _const_spec(arr):
        # Full-array block, constant index_map -> DMA'd once, VMEM-resident
        # across all batch tiles.
        return pl.BlockSpec(arr.shape, lambda i: (0,) * arr.ndim)

    in_specs = [
        pl.BlockSpec((TB, 784), lambda i: (i, 0)),               # x batch tile (f32)
        _const_spec(w1), _const_spec(b1),
        _const_spec(w2), _const_spec(b2),
        _const_spec(w3), _const_spec(b3),
        _const_spec(w4), _const_spec(b4),
    ]
    out_spec = pl.BlockSpec((TB, 10), lambda i: (i, 0))

    # Advisory cost estimate: lets XLA overlap the producer of x / consumers of
    # the logits with this HBM-bandwidth-bound kernel.
    flops = 2 * B * (784 * 128 + 128 * 64 + 64 * 16 + 16 * 10)
    weight_bytes = sum(int(w.size) * w.dtype.itemsize + int(b.size) * b.dtype.itemsize
                       for (w, b) in ((w1, b1), (w2, b2), (w3, b3), (w4, b4)))
    bytes_accessed = B * (784 * 4 + 10 * 4) + weight_bytes

    # Rough VMEM budget: double-buffered x/out tiles + (conservatively
    # double-buffered) resident weights + f32 intermediates. Only raise the
    # scoped limit if the default (16 MiB v5e / 32 MiB v6e+) would be tight,
    # and never ask past v7x's 64 MiB physical VMEM.
    vmem_need = (2 * TB * (784 * 4 + 10 * 4)
                 + 2 * weight_bytes
                 + TB * (128 + 64 + 16) * 4)
    vmem_limit = None
    if vmem_need > (14 << 20):
        vmem_limit = min(int(vmem_need * 2), 60 << 20)

    out = pl.pallas_call(
        _mlp_kernel,
        out_shape=jax.ShapeDtypeStruct((B, 10), jnp.float32),
        grid=grid,
        in_specs=in_specs,
        out_specs=out_spec,
        compiler_params=pltpu.CompilerParams(
            # Batch tiles are independent -> megacore-parallel on v7x.
            dimension_semantics=("parallel",),
            vmem_limit_bytes=vmem_limit,
        ),
        cost_estimate=pl.CostEstimate(
            flops=flops, transcendentals=0, bytes_accessed=bytes_accessed),
    )(x_flat, w1, b1, w2, b2, w3, b3, w4, b4)

    return out


def init_params(key):
    """Deterministic init matching nn.Linear shapes (weights stored as (in, out))."""
    dims = [(784, 128), (128, 64), (64, 16), (16, 10)]
    params = []
    for (fan_in, fan_out) in dims:
        key, kw, kb = jax.random.split(key, 3)
        bound = 1.0 / jnp.sqrt(fan_in)  # PyTorch nn.Linear default uniform bound
        w = jax.random.uniform(kw, (fan_in, fan_out), jnp.float32, -bound, bound)
        b = jax.random.uniform(kb, (1, fan_out), jnp.float32, -bound, bound)
        params.append((w, b))
    return params


def _reference_bf16(x, params):
    """Pure-JAX reference using the same bf16-operand / f32-accum math."""
    h = x.reshape(x.shape[0], -1)
    for i, (w, b) in enumerate(params):
        h = jnp.dot(h.astype(jnp.bfloat16), w.astype(jnp.bfloat16),
                    preferred_element_type=jnp.float32) + b
        if i < 3:
            h = jnp.maximum(h, 0.0)
    return h


def _reference_f32(x, params):
    """Full-f32 reference matching the original PyTorch module exactly."""
    h = x.reshape(x.shape[0], -1)
    for i, (w, b) in enumerate(params):
        h = h @ w + b
        if i < 3:
            h = jnp.maximum(h, 0.0)
    return h


if __name__ == "__main__":
    key = jax.random.PRNGKey(0)
    key, kx = jax.random.split(key)
    # Small MNIST-like NCHW batch that flattens to 784. B=20 with block_b=8
    # exercises the non-divisible batch grid (3 tiles, ragged last tile with
    # masked OOB writeback), in-kernel bf16 cast, and resident weights.
    x = jax.random.normal(kx, (20, 1, 28, 28), dtype=jnp.float32)
    params = init_params(key)

    out_small = jax.block_until_ready(dnn_forward(x, params, block_b=8))
    assert out_small.shape == (20, 10)
    # Default (large-tile) path: TB clamps to round_up(20, 8) = 24 -> a single
    # partially-out-of-bounds tile, still masked on write.
    out_default = jax.block_until_ready(dnn_forward(x, params))
    assert out_default.shape == (20, 10)

    ref_bf16 = _reference_bf16(x, params)   # identical bf16-at-dot math
    ref_f32 = _reference_f32(x, params)     # original PyTorch f32 semantics
    for out in (out_small, out_default):
        assert jnp.allclose(out, ref_bf16, atol=5e-3, rtol=5e-3)
        assert jnp.allclose(out, ref_f32, atol=2e-2, rtol=2e-2)

    print("KERNEL_OK")
</pallas_src>

<mosaic_0001>
module attributes {stable_mosaic.version = 11 : i64} {
  func.func @_mlp_kernel(%arg0: i32, %arg1: memref<8x784xf32, #tpu.memory_space<vmem>>, %arg2: memref<784x128xbf16, #tpu.memory_space<vmem>>, %arg3: memref<1x128xf32, #tpu.memory_space<vmem>>, %arg4: memref<128x64xbf16, #tpu.memory_space<vmem>>, %arg5: memref<1x64xf32, #tpu.memory_space<vmem>>, %arg6: memref<64x16xbf16, #tpu.memory_space<vmem>>, %arg7: memref<1x16xf32, #tpu.memory_space<vmem>>, %arg8: memref<16x10xbf16, #tpu.memory_space<vmem>>, %arg9: memref<1x10xf32, #tpu.memory_space<vmem>>, %arg10: memref<8x10xf32, #tpu.memory_space<vmem>>) attributes {dimension_semantics = [#tpu.dimension_semantics<parallel>], iteration_bounds = array<i64: 3>, scalar_prefetch = 0 : i64, scratch_operands = 0 : i64, tpu.core_type = #tpu.core_type<tc>, window_params = [{transform_indices = @transform_0, window_bounds = array<i64: 8, 784>}, {pipeline_mode = #tpu.pipeline_mode<synchronous>, transform_indices = @transform_1, window_bounds = array<i64: 784, 128>}, {pipeline_mode = #tpu.pipeline_mode<synchronous>, transform_indices = @transform_2, window_bounds = array<i64: 1, 128>}, {pipeline_mode = #tpu.pipeline_mode<synchronous>, transform_indices = @transform_3, window_bounds = array<i64: 128, 64>}, {pipeline_mode = #tpu.pipeline_mode<synchronous>, transform_indices = @transform_4, window_bounds = array<i64: 1, 64>}, {pipeline_mode = #tpu.pipeline_mode<synchronous>, transform_indices = @transform_5, window_bounds = array<i64: 64, 16>}, {pipeline_mode = #tpu.pipeline_mode<synchronous>, transform_indices = @transform_6, window_bounds = array<i64: 1, 16>}, {pipeline_mode = #tpu.pipeline_mode<synchronous>, transform_indices = @transform_7, window_bounds = array<i64: 16, 10>}, {pipeline_mode = #tpu.pipeline_mode<synchronous>, transform_indices = @transform_8, window_bounds = array<i64: 1, 10>}, {transform_indices = @transform_9, window_bounds = array<i64: 8, 10>}]} {
    %c0 = arith.constant 0 : index
    %c0_0 = arith.constant 0 : index
    %0 = vector.load %arg1[%c0, %c0_0] : memref<8x784xf32, #tpu.memory_space<vmem>>, vector<8x784xf32>
    %1 = arith.truncf %0 : vector<8x784xf32> to vector<8x784xbf16>
    %c0_1 = arith.constant 0 : index
    %c0_2 = arith.constant 0 : index
    %2 = vector.load %arg2[%c0_1, %c0_2] : memref<784x128xbf16, #tpu.memory_space<vmem>>, vector<784x128xbf16>
    %cst = arith.constant dense<0.000000e+00> : vector<8x128xf32>
    %3 = tpu.matmul %1, %2, %cst {dimension_numbers = #tpu.dot_dimension_numbers<[1], [0], [0], [1], [0, 0, 1, 1], [], []>} : vector<8x784xbf16>, vector<784x128xbf16>, vector<8x128xf32> -> vector<8x128xf32>
    %c0_3 = arith.constant 0 : index
    %c0_4 = arith.constant 0 : index
    %4 = vector.load %arg3[%c0_3, %c0_4] : memref<1x128xf32, #tpu.memory_space<vmem>>, vector<1x128xf32>
    %5 = vector.broadcast %4 : vector<1x128xf32> to vector<8x128xf32>
    %6 = arith.addf %3, %5 : vector<8x128xf32>
    %cst_5 = arith.constant 0.000000e+00 : f32
    %7 = vector.broadcast %cst_5 : f32 to vector<8x128xf32>
    %8 = arith.maximumf %6, %7 : vector<8x128xf32>
    %9 = arith.truncf %8 : vector<8x128xf32> to vector<8x128xbf16>
    %c0_6 = arith.constant 0 : index
    %c0_7 = arith.constant 0 : index
    %10 = vector.load %arg4[%c0_6, %c0_7] : memref<128x64xbf16, #tpu.memory_space<vmem>>, vector<128x64xbf16>
    %cst_8 = arith.constant dense<0.000000e+00> : vector<8x64xf32>
    %11 = tpu.matmul %9, %10, %cst_8 {dimension_numbers = #tpu.dot_dimension_numbers<[1], [0], [0], [1], [0, 0, 1, 1], [], []>} : vector<8x128xbf16>, vector<128x64xbf16>, vector<8x64xf32> -> vector<8x64xf32>
    %c0_9 = arith.constant 0 : index
    %c0_10 = arith.constant 0 : index
    %12 = vector.load %arg5[%c0_9, %c0_10] : memref<1x64xf32, #tpu.memory_space<vmem>>, vector<1x64xf32>
    %13 = vector.broadcast %12 : vector<1x64xf32> to vector<8x64xf32>
    %14 = arith.addf %11, %13 : vector<8x64xf32>
    %cst_11 = arith.constant 0.000000e+00 : f32
    %15 = vector.broadcast %cst_11 : f32 to vector<8x64xf32>
    %16 = arith.maximumf %14, %15 : vector<8x64xf32>
    %17 = arith.truncf %16 : vector<8x64xf32> to vector<8x64xbf16>
    %c0_12 = arith.constant 0 : index
    %c0_13 = arith.constant 0 : index
    %18 = vector.load %arg6[%c0_12, %c0_13] : memref<64x16xbf16, #tpu.memory_space<vmem>>, vector<64x16xbf16>
    %cst_14 = arith.constant dense<0.000000e+00> : vector<8x16xf32>
    %19 = tpu.matmul %17, %18, %cst_14 {dimension_numbers = #tpu.dot_dimension_numbers<[1], [0], [0], [1], [0, 0, 1, 1], [], []>} : vector<8x64xbf16>, vector<64x16xbf16>, vector<8x16xf32> -> vector<8x16xf32>
    %c0_15 = arith.constant 0 : index
    %c0_16 = arith.constant 0 : index
    %20 = vector.load %arg7[%c0_15, %c0_16] : memref<1x16xf32, #tpu.memory_space<vmem>>, vector<1x16xf32>
    %21 = vector.broadcast %20 : vector<1x16xf32> to vector<8x16xf32>
    %22 = arith.addf %19, %21 : vector<8x16xf32>
    %cst_17 = arith.constant 0.000000e+00 : f32
    %23 = vector.broadcast %cst_17 : f32 to vector<8x16xf32>
    %24 = arith.maximumf %22, %23 : vector<8x16xf32>
    %25 = arith.truncf %24 : vector<8x16xf32> to vector<8x16xbf16>
    %c0_18 = arith.constant 0 : index
    %c0_19 = arith.constant 0 : index
    %26 = vector.load %arg8[%c0_18, %c0_19] : memref<16x10xbf16, #tpu.memory_space<vmem>>, vector<16x10xbf16>
    %cst_20 = arith.constant dense<0.000000e+00> : vector<8x10xf32>
    %27 = tpu.matmul %25, %26, %cst_20 {dimension_numbers = #tpu.dot_dimension_numbers<[1], [0], [0], [1], [0, 0, 1, 1], [], []>} : vector<8x16xbf16>, vector<16x10xbf16>, vector<8x10xf32> -> vector<8x10xf32>
    %c0_21 = arith.constant 0 : index
    %c0_22 = arith.constant 0 : index
    %28 = vector.load %arg9[%c0_21, %c0_22] : memref<1x10xf32, #tpu.memory_space<vmem>>, vector<1x10xf32>
    %29 = vector.broadcast %28 : vector<1x10xf32> to vector<8x10xf32>
    %30 = arith.addf %27, %29 : vector<8x10xf32>
    %c0_23 = arith.constant 0 : index
    %c0_24 = arith.constant 0 : index
    %31 = vector.load %arg10[%c0_23, %c0_24] : memref<8x10xf32, #tpu.memory_space<vmem>>, vector<8x10xf32>
    tpu.vector_store %arg10[%c0_23, %c0_24], %30 {strides = array<i32>} : memref<8x10xf32, #tpu.memory_space<vmem>>, vector<8x10xf32>,
    return
  }
  func.func @transform_0(%arg0: i32) -> (i32, i32) {
    %c0_i32 = arith.constant 0 : i32
    %c0_i32_0 = arith.constant 0 : i32
    return %arg0, %c0_i32 : i32, i32
  }
  func.func @transform_1(%arg0: i32) -> (i32, i32) {
    %c0_i32 = arith.constant 0 : i32
    %c0_i32_0 = arith.constant 0 : i32
    %c0_i32_1 = arith.constant 0 : i32
    return %c0_i32, %c0_i32_0 : i32, i32
  }
  func.func @transform_2(%arg0: i32) -> (i32, i32) {
    %c0_i32 = arith.constant 0 : i32
    %c0_i32_0 = arith.constant 0 : i32
    %c0_i32_1 = arith.constant 0 : i32
    return %c0_i32, %c0_i32_0 : i32, i32
  }
  func.func @transform_3(%arg0: i32) -> (i32, i32) {
    %c0_i32 = arith.constant 0 : i32
    %c0_i32_0 = arith.constant 0 : i32
    %c0_i32_1 = arith.constant 0 : i32
    return %c0_i32, %c0_i32_0 : i32, i32
  }
  func.func @transform_4(%arg0: i32) -> (i32, i32) {
    %c0_i32 = arith.constant 0 : i32
    %c0_i32_0 = arith.constant 0 : i32
    %c0_i32_1 = arith.constant 0 : i32
    return %c0_i32, %c0_i32_0 : i32, i32
  }
  func.func @transform_5(%arg0: i32) -> (i32, i32) {
    %c0_i32 = arith.constant 0 : i32
    %c0_i32_0 = arith.constant 0 : i32
    %c0_i32_1 = arith.constant 0 : i32
    return %c0_i32, %c0_i32_0 : i32, i32
  }
  func.func @transform_6(%arg0: i32) -> (i32, i32) {
    %c0_i32 = arith.constant 0 : i32
    %c0_i32_0 = arith.constant 0 : i32
    %c0_i32_1 = arith.constant 0 : i32
    return %c0_i32, %c0_i32_0 : i32, i32
  }
  func.func @transform_7(%arg0: i32) -> (i32, i32) {
    %c0_i32 = arith.constant 0 : i32
    %c0_i32_0 = arith.constant 0 : i32
    %c0_i32_1 = arith.constant 0 : i32
    return %c0_i32, %c0_i32_0 : i32, i32
  }
  func.func @transform_8(%arg0: i32) -> (i32, i32) {
    %c0_i32 = arith.constant 0 : i32
    %c0_i32_0 = arith.constant 0 : i32
    %c0_i32_1 = arith.constant 0 : i32
    return %c0_i32, %c0_i32_0 : i32, i32
  }
  func.func @transform_9(%arg0: i32) -> (i32, i32) {
    %c0_i32 = arith.constant 0 : i32
    %c0_i32_0 = arith.constant 0 : i32
    return %arg0, %c0_i32 : i32, i32
  }
}

</mosaic_0001>

<llo_original>
// kernel: tpu_custom_call.1
$region0: #{tpu_custom_call.1}
  #allocation0 [shape = 'u32[]', space=smem, size = 0x4, offset = 0x4, fixed_abs, tag = 'smem constant byte address 0x4 - core index']
  #allocation1 [shape = 'u32[144,128]{1,0:T(1,128)}', space=vmem, size = 0x12000, scoped, tag = 'internal scratch']
  %s0 = inlined_call_operand.hbm [shape: f32[20,784], index: 0, kind: input, shape index: {}]
  %s1 = inlined_call_operand.hbm [shape: bf16[784,128], index: 1, kind: input, shape index: {}]
  %s2 = inlined_call_operand.vmem [shape: f32[1,128], index: 2, kind: input, shape index: {}]
  %s3 = inlined_call_operand.vmem [shape: bf16[128,64], index: 3, kind: input, shape index: {}]
  %s4 = inlined_call_operand.vmem [shape: f32[1,64], index: 4, kind: input, shape index: {}]
  %s5 = inlined_call_operand.vmem [shape: bf16[64,16], index: 5, kind: input, shape index: {}]
  %s6 = inlined_call_operand.vmem [shape: f32[1,16], index: 6, kind: input, shape index: {}]
  %s7 = inlined_call_operand.vmem [shape: bf16[16,10], index: 7, kind: input, shape index: {}]
  %s8 = inlined_call_operand.vmem [shape: f32[1,10], index: 8, kind: input, shape index: {}]
  %s9 = inlined_call_operand.vmem [shape: f32[20,10], index: 9, kind: output, shape index: {}]
  %s10 = sld [smem:[#allocation0]]
  $region77: #{tpu_custom_call.1} parent=0
    _
  %s12 = ssub.s32 1, %s10
  %s13 = scalar_select 0, %s12, %s10
  $region1: #{tpu_custom_call.1} parent=0
    #allocation2 [shape = 'u8[57344]{0}', space=vmem, size = 0xe000, scoped, tag = 'input window, operand 0']
    #allocation3 [shape = 's32[2]{0}', space=sflag, size = 0x8, scoped, tag = 'scoped memory for tpu_custom_call.1']
    #allocation4 [shape = 'u8[200704]{0}', space=vmem, size = 0x31000, scoped, tag = 'input window, operand 1, single buffered']
    #allocation5 [shape = 's32[1]{0}', space=sflag, size = 0x4, scoped, tag = 'scoped memory for tpu_custom_call.1']
    %14 = vsyncpa [#allocation3], 0
    %s15 = scalar_lea.sflag [#allocation3], 1
    %16 = vsyncpa %s15, 0
    %17 = vsyncpa [#allocation5], 0
    loop: start=0, step=1, limit=5
    $region2: #{tpu_custom_call.1} parent=1 // loop_pre_header
      _
    $region3: #{tpu_custom_call.1} parent=1 // loop_header
      %s19 = sphi 0, %s23
      %p20 = scmp.ge.s32.totalorder %s19, 5
      %s29 = sphi 0, %s31
      %s32 = sphi 0, %s29
      %s33 = sphi 0, %s32
      %s49 = sphi 0, %s33
      %s53 = sphi 0, %s53
      %s55 = sphi 0, %s53
      %s56 = sphi 0, %s55
      %s70 = sphi 0, %s56
      %s74 = sphi 0, %s74
      %s76 = sphi 0, %s74
      %s77 = sphi 0, %s76
      %s91 = sphi 0, %s77
      %s95 = sphi 0, %s95
      %s97 = sphi 0, %s95
      %s98 = sphi 0, %s97
      %s112 = sphi 0, %s98
      %s116 = sphi 0, %s116
      %s118 = sphi 0, %s116
      %s119 = sphi 0, %s118
      %s133 = sphi 0, %s119
      %s137 = sphi 0, %s137
      %s139 = sphi 0, %s137
      %s140 = sphi 0, %s139
      %s154 = sphi 0, %s140
      %s158 = sphi 0, %s158
      %s160 = sphi 0, %s158
      %s161 = sphi 0, %s160
      %s175 = sphi 0, %s161
      %s179 = sphi 0, %s179
      %s181 = sphi 0, %s179
      %s182 = sphi 0, %s181
      %s196 = sphi 0, %s182
      %s200 = sphi 0, %s200
      %s202 = sphi 0, %s200
      %s203 = sphi 0, %s202
      %s217 = sphi 0, %s203
      %s223 = sphi 0, %s225
      %s226 = sphi 0, %s223
      %s227 = sphi 0, %s226
      %s243 = sphi 0, %s227
    $region4: #{tpu_custom_call.1} parent=1 // loop_header_branch
      %22 = sbr.rel (%p20) target = $region8
    $region5: #{tpu_custom_call.1} parent=1 // loop_body
      %s24 = ssub.s32 %s19, 1
      %s25 = ssub.s32 %s19, 2
      %s26 = sadd.s32 %s19, 1
      %s27 = ssub.s32 %s19, %s26
      %p28 = scmp.eq.s32.totalorder %s27, 0
      %s30 = sadd.s32 %s29, 1
      %s31 = scalar_select %p28, %s29, %s30
      %p34 = pneg %p28
      %p35 = scmp.eq.s32.totalorder %s19, 2
      %p36 = por %p34, %p35
      %p37 = scmp.ne.s32.totalorder %s29, %s32
      %p38 = scmp.eq.s32.totalorder %s19, 0
      %p39 = por %p37, %p38
      %p40 = scmp.ne.s32.totalorder %s29, %s32
      %p41 = scmp.eq.s32.totalorder %s24, 2
      %p42 = por %p40, %p41
      %p43 = scmp.ne.s32.totalorder %s32, %s33
      %p44 = scmp.eq.s32.totalorder %s24, 0
      %p45 = por %p43, %p44
      %p46 = scmp.ne.s32.totalorder %s32, %s33
      %p47 = scmp.eq.s32.totalorder %s25, 2
      %p48 = por %p46, %p47
      %p50 = scmp.ne.s32.totalorder %s33, %s49
      %p51 = scmp.eq.s32.totalorder %s25, 0
      %p52 = por %p50, %p51
      %s54 = sadd.s32 %s53, 1
      %p57 = scmp.eq.s32.totalorder %s19, 2
      %p58 = scmp.ne.s32.totalorder %s53, %s55
      %p59 = scmp.eq.s32.totalorder %s19, 0
      %p60 = por %p58, %p59
      %p61 = scmp.ne.s32.totalorder %s53, %s55
      %p62 = scmp.eq.s32.totalorder %s24, 2
      %p63 = por %p61, %p62
      %p64 = scmp.ne.s32.totalorder %s55, %s56
      %p65 = scmp.eq.s32.totalorder %s24, 0
      %p66 = por %p64, %p65
      %p67 = scmp.ne.s32.totalorder %s55, %s56
      %p68 = scmp.eq.s32.totalorder %s25, 2
      %p69 = por %p67, %p68
      %p71 = scmp.ne.s32.totalorder %s56, %s70
      %p72 = scmp.eq.s32.totalorder %s25, 0
      %p73 = por %p71, %p72
      %s75 = sadd.s32 %s74, 1
      %p78 = scmp.eq.s32.totalorder %s19, 2
      %p79 = scmp.ne.s32.totalorder %s74, %s76
      %p80 = scmp.eq.s32.totalorder %s19, 0
      %p81 = por %p79, %p80
      %p82 = scmp.ne.s32.totalorder %s74, %s76
      %p83 = scmp.eq.s32.totalorder %s24, 2
      %p84 = por %p82, %p83
      %p85 = scmp.ne.s32.totalorder %s76, %s77
      %p86 = scmp.eq.s32.totalorder %s24, 0
      %p87 = por %p85, %p86
      %p88 = scmp.ne.s32.totalorder %s76, %s77
      %p89 = scmp.eq.s32.totalorder %s25, 2
      %p90 = por %p88, %p89
      %p92 = scmp.ne.s32.totalorder %s77, %s91
      %p93 = scmp.eq.s32.totalorder %s25, 0
      %p94 = por %p92, %p93
      %s96 = sadd.s32 %s95, 1
      %p99 = scmp.eq.s32.totalorder %s19, 2
      %p100 = scmp.ne.s32.totalorder %s95, %s97
      %p101 = scmp.eq.s32.totalorder %s19, 0
      %p102 = por %p100, %p101
      %p103 = scmp.ne.s32.totalorder %s95, %s97
      %p104 = scmp.eq.s32.totalorder %s24, 2
      %p105 = por %p103, %p104
      %p106 = scmp.ne.s32.totalorder %s97, %s98
      %p107 = scmp.eq.s32.totalorder %s24, 0
      %p108 = por %p106, %p107
      %p109 = scmp.ne.s32.totalorder %s97, %s98
      %p110 = scmp.eq.s32.totalorder %s25, 2
      %p111 = por %p109, %p110
      %p113 = scmp.ne.s32.totalorder %s98, %s112
      %p114 = scmp.eq.s32.totalorder %s25, 0
      %p115 = por %p113, %p114
      %s117 = sadd.s32 %s116, 1
      %p120 = scmp.eq.s32.totalorder %s19, 2
      %p121 = scmp.ne.s32.totalorder %s116, %s118
      %p122 = scmp.eq.s32.totalorder %s19, 0
      %p123 = por %p121, %p122
      %p124 = scmp.ne.s32.totalorder %s116, %s118
      %p125 = scmp.eq.s32.totalorder %s24, 2
      %p126 = por %p124, %p125
      %p127 = scmp.ne.s32.totalorder %s118, %s119
      %p128 = scmp.eq.s32.totalorder %s24, 0
      %p129 = por %p127, %p128
      %p130 = scmp.ne.s32.totalorder %s118, %s119
      %p131 = scmp.eq.s32.totalorder %s25, 2
      %p132 = por %p130, %p131
      %p134 = scmp.ne.s32.totalorder %s119, %s133
      %p135 = scmp.eq.s32.totalorder %s25, 0
      %p136 = por %p134, %p135
      %s138 = sadd.s32 %s137, 1
      %p141 = scmp.eq.s32.totalorder %s19, 2
      %p142 = scmp.ne.s32.totalorder %s137, %s139
      %p143 = scmp.eq.s32.totalorder %s19, 0
      %p144 = por %p142, %p143
      %p145 = scmp.ne.s32.totalorder %s137, %s139
      %p146 = scmp.eq.s32.totalorder %s24, 2
      %p147 = por %p145, %p146
      %p148 = scmp.ne.s32.totalorder %s139, %s140
      %p149 = scmp.eq.s32.totalorder %s24, 0
      %p150 = por %p148, %p149
      %p151 = scmp.ne.s32.totalorder %s139, %s140
      %p152 = scmp.eq.s32.totalorder %s25, 2
      %p153 = por %p151, %p152
      %p155 = scmp.ne.s32.totalorder %s140, %s154
      %p156 = scmp.eq.s32.totalorder %s25, 0
      %p157 = por %p155, %p156
      %s159 = sadd.s32 %s158, 1
      %p162 = scmp.eq.s32.totalorder %s19, 2
      %p163 = scmp.ne.s32.totalorder %s158, %s160
      %p164 = scmp.eq.s32.totalorder %s19, 0
      %p165 = por %p163, %p164
      %p166 = scmp.ne.s32.totalorder %s158, %s160
      %p167 = scmp.eq.s32.totalorder %s24, 2
      %p168 = por %p166, %p167
      %p169 = scmp.ne.s32.totalorder %s160, %s161
      %p170 = scmp.eq.s32.totalorder %s24, 0
      %p171 = por %p169, %p170
      %p172 = scmp.ne.s32.totalorder %s160, %s161
      %p173 = scmp.eq.s32.totalorder %s25, 2
      %p174 = por %p172, %p173
      %p176 = scmp.ne.s32.totalorder %s161, %s175
      %p177 = scmp.eq.s32.totalorder %s25, 0
      %p178 = por %p176, %p177
      %s180 = sadd.s32 %s179, 1
      %p183 = scmp.eq.s32.totalorder %s19, 2
      %p184 = scmp.ne.s32.totalorder %s179, %s181
      %p185 = scmp.eq.s32.totalorder %s19, 0
      %p186 = por %p184, %p185
      %p187 = scmp.ne.s32.totalorder %s179, %s181
      %p188 = scmp.eq.s32.totalorder %s24, 2
      %p189 = por %p187, %p188
      %p190 = scmp.ne.s32.totalorder %s181, %s182
      %p191 = scmp.eq.s32.totalorder %s24, 0
      %p192 = por %p190, %p191
      %p193 = scmp.ne.s32.totalorder %s181, %s182
      %p194 = scmp.eq.s32.totalorder %s25, 2
      %p195 = por %p193, %p194
      %p197 = scmp.ne.s32.totalorder %s182, %s196
      %p198 = scmp.eq.s32.totalorder %s25, 0
      %p199 = por %p197, %p198
      %s201 = sadd.s32 %s200, 1
      %p204 = scmp.eq.s32.totalorder %s19, 2
      %p205 = scmp.ne.s32.totalorder %s200, %s202
      %p206 = scmp.eq.s32.totalorder %s19, 0
      %p207 = por %p205, %p206
      %p208 = scmp.ne.s32.totalorder %s200, %s202
      %p209 = scmp.eq.s32.totalorder %s24, 2
      %p210 = por %p208, %p209
      %p211 = scmp.ne.s32.totalorder %s202, %s203
      %p212 = scmp.eq.s32.totalorder %s24, 0
      %p213 = por %p211, %p212
      %p214 = scmp.ne.s32.totalorder %s202, %s203
      %p215 = scmp.eq.s32.totalorder %s25, 2
      %p216 = por %p214, %p215
      %p218 = scmp.ne.s32.totalorder %s203, %s217
      %p219 = scmp.eq.s32.totalorder %s25, 0
      %p220 = por %p218, %p219
      %s221 = ssub.s32 %s19, %s26
      %p222 = scmp.eq.s32.totalorder %s221, 0
      %s224 = sadd.s32 %s223, 1
      %s225 = scalar_select %p222, %s223, %s224
      %p228 = pneg %p222
      %p229 = scmp.eq.s32.totalorder %s19, 2
      %p230 = por %p228, %p229
      %p231 = scmp.ne.s32.totalorder %s223, %s226
      %p232 = scmp.eq.s32.totalorder %s19, 0
      %p233 = por %p231, %p232
      %p234 = scmp.ne.s32.totalorder %s223, %s226
      %p235 = scmp.eq.s32.totalorder %s24, 2
      %p236 = por %p234, %p235
      %p237 = scmp.ne.s32.totalorder %s226, %s227
      %p238 = scmp.eq.s32.totalorder %s24, 0
      %p239 = por %p237, %p238
      %p240 = scmp.ne.s32.totalorder %s226, %s227
      %p241 = scmp.eq.s32.totalorder %s25, 2
      %p242 = por %p240, %p241
      %p244 = scmp.ne.s32.totalorder %s227, %s243
      %p245 = scmp.eq.s32.totalorder %s25, 0
      %p246 = por %p244, %p245
      %p247 = scmp.le.s32.totalorder 1, %s19
      %p248 = scmp.lt.s32.totalorder %s19, 4
      %p249 = pnand %p247, %p248
      %p250 = pneg %p249
      // Predicated region
      $region9: #{tpu_custom_call.1} parent=5 // pred_check
        _
      $region10: #{tpu_custom_call.1} parent=5 // pred_check_branch
        %252 = sbr.rel (%p249) target = $region12
      $region11: #{tpu_custom_call.1} parent=5 // pred_region
        %s253 = ssub.s32 %s19, 1
        // Predicated region
        $region13: #{tpu_custom_call.1} parent=11 // pred_check
          %p254 = pneg %p66
        $region14: #{tpu_custom_call.1} parent=11 // pred_check_branch
          %256 = sbr.rel (%p254) target = $region16
        $region15: #{tpu_custom_call.1} parent=11 // pred_region
          %s258 = ssub.s32 6272, 6272
          %259 = vsyncadd [#allocation5], %s258
          %s260 = sshll.u32 [#allocation4], 4
          %s261 = int_to_ptr.vmem [resolvable:$true] %s260
          %266 = dma.hbm_to_vmem [thread:$0]  %s1, 6272, %s261, [#allocation5], 64, 64, 4
        $region16: #{tpu_custom_call.1} parent=11 // pred_fallthru
          _
        // Predicated region
        $region17: #{tpu_custom_call.1} parent=11 // pred_check
          %p267 = pneg %p87
        $region18: #{tpu_custom_call.1} parent=11 // pred_check_branch
          %269 = sbr.rel (%p267) target = $region20
        $region19: #{tpu_custom_call.1} parent=11 // pred_region
          _
        $region20: #{tpu_custom_call.1} parent=11 // pred_fallthru
          _
        // Predicated region
        $region21: #{tpu_custom_call.1} parent=11 // pred_check
          %p270 = pneg %p108
        $region22: #{tpu_custom_call.1} parent=11 // pred_check_branch
          %272 = sbr.rel (%p270) target = $region24
        $region23: #{tpu_custom_call.1} parent=11 // pred_region
          _
        $region24: #{tpu_custom_call.1} parent=11 // pred_fallthru
          _
        // Predicated region
        $region25: #{tpu_custom_call.1} parent=11 // pred_check
          %p273 = pneg %p129
        $region26: #{tpu_custom_call.1} parent=11 // pred_check_branch
          %275 = sbr.rel (%p273) target = $region28
        $region27: #{tpu_custom_call.1} parent=11 // pred_region
          _
        $region28: #{tpu_custom_call.1} parent=11 // pred_fallthru
          _
        // Predicated region
        $region29: #{tpu_custom_call.1} parent=11 // pred_check
          %p276 = pneg %p150
        $region30: #{tpu_custom_call.1} parent=11 // pred_check_branch
          %278 = sbr.rel (%p276) target = $region32
        $region31: #{tpu_custom_call.1} parent=11 // pred_region
          _
        $region32: #{tpu_custom_call.1} parent=11 // pred_fallthru
          _
        // Predicated region
        $region33: #{tpu_custom_call.1} parent=11 // pred_check
          %p279 = pneg %p171
        $region34: #{tpu_custom_call.1} parent=11 // pred_check_branch
          %281 = sbr.rel (%p279) target = $region36
        $region35: #{tpu_custom_call.1} parent=11 // pred_region
          _
        $region36: #{tpu_custom_call.1} parent=11 // pred_fallthru
          _
        // Predicated region
        $region37: #{tpu_custom_call.1} parent=11 // pred_check
          %p282 = pneg %p192
        $region38: #{tpu_custom_call.1} parent=11 // pred_check_branch
          %284 = sbr.rel (%p282) target = $region40
        $region39: #{tpu_custom_call.1} parent=11 // pred_region
          _
        $region40: #{tpu_custom_call.1} parent=11 // pred_fallthru
          _
        // Predicated region
        $region41: #{tpu_custom_call.1} parent=11 // pred_check
          %p285 = pneg %p213
        $region42: #{tpu_custom_call.1} parent=11 // pred_check_branch
          %287 = sbr.rel (%p285) target = $region44
        $region43: #{tpu_custom_call.1} parent=11 // pred_region
          _
        $region44: #{tpu_custom_call.1} parent=11 // pred_fallthru
          _
      $region12: #{tpu_custom_call.1} parent=5 // pred_fallthru
        _
      %p288 = scmp.lt.s32.totalorder %s19, 3
      // Predicated region
      $region45: #{tpu_custom_call.1} parent=5 // pred_check
        %p289 = pneg %p288
      $region46: #{tpu_custom_call.1} parent=5 // pred_check_branch
        %291 = sbr.rel (%p289) target = $region48
      $region47: #{tpu_custom_call.1} parent=5 // pred_region
        // Predicated region
        $region49: #{tpu_custom_call.1} parent=47 // pred_check
          %p292 = pneg %p39
        $region50: #{tpu_custom_call.1} parent=47 // pred_check_branch
          %294 = sbr.rel (%p292) target = $region52
        $region51: #{tpu_custom_call.1} parent=47 // pred_region
          %s295 = sand.u32 %s29, 1
          %s296 = scalar_lea.sflag [#allocation3], %s295
          %s297 = sand.u32 %s29, 1
          %s298 = smul.addr %s297, 56
          %s299 = scalar_lea.vmem [#allocation2], %s298
          %s301 = ssub.s32 896, 896
          %302 = vsyncadd %s296, %s301
          %s303 = smul.addr %s19, 7
          %s304 = smul.addr %s303, 128
          %s305 = scalar_lea.hbm %s0, %s304
          %s307 = sshll.u32 %s299, 4
          %s308 = int_to_ptr.vmem [resolvable:$true] %s307
          %310 = dma.hbm_to_vmem [thread:$0]  %s305, 896, %s308, %s296
        $region52: #{tpu_custom_call.1} parent=47 // pred_fallthru
          _
      $region48: #{tpu_custom_call.1} parent=5 // pred_fallthru
        _
      %p311 = scmp.le.s32.totalorder 1, %s19
      %p312 = scmp.lt.s32.totalorder %s19, 4
      %p313 = pnand %p311, %p312
      %p314 = pneg %p313
      // Predicated region
      $region53: #{tpu_custom_call.1} parent=5 // pred_check
        _
      $region54: #{tpu_custom_call.1} parent=5 // pred_check_branch
        %316 = sbr.rel (%p313) target = $region56
      $region55: #{tpu_custom_call.1} parent=5 // pred_region
        %s317 = ssub.s32 %s19, 1
        %s318 = sand.u32 %s32, 1
        %s319 = scalar_lea.sflag [#allocation3], %s318
        %s320 = sand.u32 %s32, 1
        %s321 = smul.addr %s320, 56
        %s322 = scalar_lea.vmem [#allocation2], %s321
        // Predicated region
        $region57: #{tpu_custom_call.1} parent=55 // pred_check
          %p323 = pneg %p45
        $region58: #{tpu_custom_call.1} parent=55 // pred_check_branch
          %325 = sbr.rel (%p323) target = $region60
        $region59: #{tpu_custom_call.1} parent=55 // pred_region
          %326 = dma.done %s319, 896
        $region60: #{tpu_custom_call.1} parent=55 // pred_fallthru
          _
        // Predicated region
        $region61: #{tpu_custom_call.1} parent=55 // pred_check
          %p327 = pneg %p66
        $region62: #{tpu_custom_call.1} parent=55 // pred_check_branch
          %329 = sbr.rel (%p327) target = $region64
        $region63: #{tpu_custom_call.1} parent=55 // pred_region
          %330 = dma.done [#allocation5], 6272
        $region64: #{tpu_custom_call.1} parent=55 // pred_fallthru
          _
        %s331 = sand.u32 %s32, 1
        %s332 = scalar_lea.sflag [#allocation3], %s331
        %s333 = sand.u32 %s32, 1
        %s334 = smul.addr %s333, 56
        %s335 = scalar_lea.vmem [#allocation2], %s334
        %p336 = pneg %p45
        %p337 = pneg %p42
        %p338 = pneg %p66
        %p339 = pneg %p63
        %p340 = pneg %p87
        %p341 = pneg %p84
        %p342 = pneg %p108
        %p343 = pneg %p105
        %p344 = pneg %p129
        %p345 = pneg %p126
        %p346 = pneg %p150
        %p347 = pneg %p147
        %p348 = pneg %p171
        %p349 = pneg %p168
        %p350 = pneg %p192
        %p351 = pneg %p189
        %p352 = pneg %p213
        %p353 = pneg %p210
        %p354 = pneg %p239
        %p355 = pneg %p236
        %p356 = scmp.lt.s32.totalorder %s24, 2
        %s357 = scalar_select %p356, %s24, 2
        %s358 = smul.addr %s357, 8
        %s359 = scalar_lea.vmem %s9, %s358
        %p360 = scmp.lt.s32.totalorder %s24, 2
        %s361 = scalar_select %p360, %s24, 2
        %s362 = smul.addr %s361, 8
        %s363 = scalar_lea.vmem %s9, %s362
        %v365 = vld [vmem:[%s322] sm:$0xff]
        %v366 = vld [vmem:[%s322 + $0x8] sm:$0xff]
        %v367 = vld [vmem:[%s322 + $0x10] sm:$0xff]
        %v368 = vld [vmem:[%s322 + $0x18] sm:$0xff]
        %v369 = vld [vmem:[%s322 + $0x20] sm:$0xff]
        %v370 = vld [vmem:[%s322 + $0x28] sm:$0xff]
        %v371 = vld [vmem:[%s322 + $0x30] sm:$0xff]
        %v372 = vpack.c.bf16 %v365, %v365
        %v373 = vpack.c.bf16 %v366, %v366
        %v374 = vpack.c.bf16 %v367, %v367
        %v375 = vpack.c.bf16 %v368, %v368
        %v376 = vpack.c.bf16 %v369, %v369
        %v377 = vpack.c.bf16 %v370, %v370
        %v378 = vpack.c.bf16 %v371, %v371
        %v379 = vld [vmem:[#allocation4] sm:$0xf]
        %v380 = vld [vmem:[#allocation4 + $0x4] sm:$0xf]
        %v381 = vld [vmem:[#allocation4 + $0x8] sm:$0xf]
        %v382 = vld [vmem:[#allocation4 + $0xc] sm:$0xf]
        %v383 = vld [vmem:[#allocation4 + $0x10] sm:$0xf]
        %v384 = vld [vmem:[#allocation4 + $0x14] sm:$0xf]
        %v385 = vld [vmem:[#allocation4 + $0x18] sm:$0xf]
        %v386 = vld [vmem:[#allocation4 + $0x1c] sm:$0xf]
        %v387 = vld [vmem:[#allocation4 + $0x20] sm:$0xf]
        %v388 = vld [vmem:[#allocation4 + $0x24] sm:$0xf]
        %v389 = vld [vmem:[#allocation4 + $0x28] sm:$0xf]
        %v390 = vld [vmem:[#allocation4 + $0x2c] sm:$0xf]
        %v391 = vld [vmem:[#allocation4 + $0x30] sm:$0xf]
        %v392 = vld [vmem:[#allocation4 + $0x34] sm:$0xf]
        %v393 = vld [vmem:[#allocation4 + $0x38] sm:$0xf]
        %v394 = vld [vmem:[#allocation4 + $0x3c] sm:$0xf]
        %v395 = vld [vmem:[#allocation4 + $0x40] sm:$0xf]
        %v396 = vld [vmem:[#allocation4 + $0x44] sm:$0xf]
        %v397 = vld [vmem:[#allocation4 + $0x48] sm:$0xf]
        %v398 = vld [vmem:[#allocation4 + $0x4c] sm:$0xf]
        %v399 = vld [vmem:[#allocation4 + $0x50] sm:$0xf]
        %v400 = vld [vmem:[#allocation4 + $0x54] sm:$0xf]
        %v401 = vld [vmem:[#allocation4 + $0x58] sm:$0xf]
        %v402 = vld [vmem:[#allocation4 + $0x5c] sm:$0xf]
        %v403 = vld [vmem:[#allocation4 + $0x60] sm:$0xf]
        %v404 = vld [vmem:[#allocation4 + $0x64] sm:$0xf]
        %v405 = vld [vmem:[#allocation4 + $0x68] sm:$0xf]
        %v406 = vld [vmem:[#allocation4 + $0x6c] sm:$0xf]
        %v407 = vld [vmem:[#allocation4 + $0x70] sm:$0xf]
        %v408 = vld [vmem:[#allocation4 + $0x74] sm:$0xf]
        %v409 = vld [vmem:[#allocation4 + $0x78] sm:$0xf]
        %v410 = vld [vmem:[#allocation4 + $0x7c] sm:$0xf]
        %v411 = vld [vmem:[#allocation4 + $0x80] sm:$0xf]
        %v412 = vld [vmem:[#allocation4 + $0x84] sm:$0xf]
        %v413 = vld [vmem:[#allocation4 + $0x88] sm:$0xf]
        %v414 = vld [vmem:[#allocation4 + $0x8c] sm:$0xf]
        %v415 = vld [vmem:[#allocation4 + $0x90] sm:$0xf]
        %v416 = vld [vmem:[#allocation4 + $0x94] sm:$0xf]
        %v417 = vld [vmem:[#allocation4 + $0x98] sm:$0xf]
        %v418 = vld [vmem:[#allocation4 + $0x9c] sm:$0xf]
        %v419 = vld [vmem:[#allocation4 + $0xa0] sm:$0xf]
        %v420 = vld [vmem:[#allocation4 + $0xa4] sm:$0xf]
        %v421 = vld [vmem:[#allocation4 + $0xa8] sm:$0xf]
        %v422 = vld [vmem:[#allocation4 + $0xac] sm:$0xf]
        %v423 = vld [vmem:[#allocation4 + $0xb0] sm:$0xf]
        %v424 = vld [vmem:[#allocation4 + $0xb4] sm:$0xf]
        %v425 = vld [vmem:[#allocation4 + $0xb8] sm:$0xf]
        %v426 = vld [vmem:[#allocation4 + $0xbc] sm:$0xf]
        %v427 = vld [vmem:[#allocation4 + $0xc0] sm:$0xf]
        %v428 = vld [vmem:[#allocation4 + $0xc4] sm:$0xf]
        %v429 = vld [vmem:[#allocation4 + $0xc8] sm:$0xf]
        %v430 = vld [vmem:[#allocation4 + $0xcc] sm:$0xf]
        %v431 = vld [vmem:[#allocation4 + $0xd0] sm:$0xf]
        %v432 = vld [vmem:[#allocation4 + $0xd4] sm:$0xf]
        %v433 = vld [vmem:[#allocation4 + $0xd8] sm:$0xf]
        %v434 = vld [vmem:[#allocation4 + $0xdc] sm:$0xf]
        %v435 = vld [vmem:[#allocation4 + $0xe0] sm:$0xf]
        %v436 = vld [vmem:[#allocation4 + $0xe4] sm:$0xf]
        %v437 = vld [vmem:[#allocation4 + $0xe8] sm:$0xf]
        %v438 = vld [vmem:[#allocation4 + $0xec] sm:$0xf]
        %v439 = vld [vmem:[#allocation4 + $0xf0] sm:$0xf]
        %v440 = vld [vmem:[#allocation4 + $0xf4] sm:$0xf]
        %v441 = vld [vmem:[#allocation4 + $0xf8] sm:$0xf]
        %v442 = vld [vmem:[#allocation4 + $0xfc] sm:$0xf]
        %v443 = vld [vmem:[#allocation4 + $0x100] sm:$0xf]
        %v444 = vld [vmem:[#allocation4 + $0x104] sm:$0xf]
        %v445 = vld [vmem:[#allocation4 + $0x108] sm:$0xf]
        %v446 = vld [vmem:[#allocation4 + $0x10c] sm:$0xf]
        %v447 = vld [vmem:[#allocation4 + $0x110] sm:$0xf]
        %v448 = vld [vmem:[#allocation4 + $0x114] sm:$0xf]
        %v449 = vld [vmem:[#allocation4 + $0x118] sm:$0xf]
        %v450 = vld [vmem:[#allocation4 + $0x11c] sm:$0xf]
        %v451 = vld [vmem:[#allocation4 + $0x120] sm:$0xf]
        %v452 = vld [vmem:[#allocation4 + $0x124] sm:$0xf]
        %v453 = vld [vmem:[#allocation4 + $0x128] sm:$0xf]
        %v454 = vld [vmem:[#allocation4 + $0x12c] sm:$0xf]
        %v455 = vld [vmem:[#allocation4 + $0x130] sm:$0xf]
        %v456 = vld [vmem:[#allocation4 + $0x134] sm:$0xf]
        %v457 = vld [vmem:[#allocation4 + $0x138] sm:$0xf]
        %v458 = vld [vmem:[#allocation4 + $0x13c] sm:$0xf]
        %v459 = vld [vmem:[#allocation4 + $0x140] sm:$0xf]
        %v460 = vld [vmem:[#allocation4 + $0x144] sm:$0xf]
        %v461 = vld [vmem:[#allocation4 + $0x148] sm:$0xf]
        %v462 = vld [vmem:[#allocation4 + $0x14c] sm:$0xf]
        %v463 = vld [vmem:[#allocation4 + $0x150] sm:$0xf]
        %v464 = vld [vmem:[#allocation4 + $0x154] sm:$0xf]
        %v465 = vld [vmem:[#allocation4 + $0x158] sm:$0xf]
        %v466 = vld [vmem:[#allocation4 + $0x15c] sm:$0xf]
        %v467 = vld [vmem:[#allocation4 + $0x160] sm:$0xf]
        %v468 = vld [vmem:[#allocation4 + $0x164] sm:$0xf]
        %v469 = vld [vmem:[#allocation4 + $0x168] sm:$0xf]
        %v470 = vld [vmem:[#allocation4 + $0x16c] sm:$0xf]
        %v471 = vld [vmem:[#allocation4 + $0x170] sm:$0xf]
        %v472 = vld [vmem:[#allocation4 + $0x174] sm:$0xf]
        %v473 = vld [vmem:[#allocation4 + $0x178] sm:$0xf]
        %v474 = vld [vmem:[#allocation4 + $0x17c] sm:$0xf]
        %v475 = vld [vmem:[#allocation4 + $0x180] sm:$0xf]
        %v476 = vld [vmem:[#allocation4 + $0x184] sm:$0xf]
        %v477 = vld [vmem:[%s2] sm:$0x1]
        %v479 = vlaneseq
        %v480 = vshrl.u32 %v479, 7
        %v481 = vsub.s32 0, %v480
        %v482 = vrot.slane %v477, %v481
        %v582 = vunpack.c.l.b16 %v379
        %v583 = vunpack.c.l.b16 %v380
        %v584 = vunpack.c.l.b16 %v381
        %v585 = vunpack.c.l.b16 %v382
        %v586 = vunpack.c.l.b16 %v383
        %v587 = vunpack.c.l.b16 %v384
        %v588 = vunpack.c.l.b16 %v385
        %v589 = vunpack.c.l.b16 %v386
        %v590 = vunpack.c.l.b16 %v387
        %v591 = vunpack.c.l.b16 %v388
        %v592 = vunpack.c.l.b16 %v389
        %v593 = vunpack.c.l.b16 %v390
        %v594 = vunpack.c.l.b16 %v391
        %v595 = vunpack.c.l.b16 %v392
        %v596 = vunpack.c.l.b16 %v393
        %v597 = vunpack.c.l.b16 %v394
        %v598 = vunpack.c.l.b16 %v395
        %v599 = vunpack.c.l.b16 %v396
        %v600 = vunpack.c.l.b16 %v397
        %v601 = vunpack.c.l.b16 %v398
        %v602 = vunpack.c.l.b16 %v399
        %v603 = vunpack.c.l.b16 %v400
        %v604 = vunpack.c.l.b16 %v401
        %v605 = vunpack.c.l.b16 %v402
        %v606 = vunpack.c.l.b16 %v403
        %v607 = vunpack.c.l.b16 %v404
        %v608 = vunpack.c.l.b16 %v405
        %v609 = vunpack.c.l.b16 %v406
        %v610 = vunpack.c.l.b16 %v407
        %v611 = vunpack.c.l.b16 %v408
        %v612 = vunpack.c.l.b16 %v409
        %v613 = vunpack.c.l.b16 %v410
        %v614 = vunpack.c.l.b16 %v411
        %v615 = vunpack.c.l.b16 %v412
        %v616 = vunpack.c.l.b16 %v413
        %v617 = vunpack.c.l.b16 %v414
        %v618 = vunpack.c.l.b16 %v415
        %v619 = vunpack.c.l.b16 %v416
        %v620 = vunpack.c.l.b16 %v417
        %v621 = vunpack.c.l.b16 %v418
        %v622 = vunpack.c.l.b16 %v419
        %v623 = vunpack.c.l.b16 %v420
        %v624 = vunpack.c.l.b16 %v421
        %v625 = vunpack.c.l.b16 %v422
        %v626 = vunpack.c.l.b16 %v423
        %v627 = vunpack.c.l.b16 %v424
        %v628 = vunpack.c.l.b16 %v425
        %v629 = vunpack.c.l.b16 %v426
        %v630 = vunpack.c.l.b16 %v427
        %v631 = vunpack.c.l.b16 %v428
        %v632 = vunpack.c.l.b16 %v429
        %v633 = vunpack.c.l.b16 %v430
        %v634 = vunpack.c.l.b16 %v431
        %v635 = vunpack.c.l.b16 %v432
        %v636 = vunpack.c.l.b16 %v433
        %v637 = vunpack.c.l.b16 %v434
        %v638 = vunpack.c.l.b16 %v435
        %v639 = vunpack.c.l.b16 %v436
        %v640 = vunpack.c.l.b16 %v437
        %v641 = vunpack.c.l.b16 %v438
        %v642 = vunpack.c.l.b16 %v439
        %v643 = vunpack.c.l.b16 %v440
        %v644 = vunpack.c.l.b16 %v441
        %v645 = vunpack.c.l.b16 %v442
        %v646 = vunpack.c.l.b16 %v443
        %v647 = vunpack.c.l.b16 %v444
        %v648 = vunpack.c.l.b16 %v445
        %v649 = vunpack.c.l.b16 %v446
        %v650 = vunpack.c.l.b16 %v447
        %v651 = vunpack.c.l.b16 %v448
        %v652 = vunpack.c.l.b16 %v449
        %v653 = vunpack.c.l.b16 %v450
        %v654 = vunpack.c.l.b16 %v451
        %v655 = vunpack.c.l.b16 %v452
        %v656 = vunpack.c.l.b16 %v453
        %v657 = vunpack.c.l.b16 %v454
        %v658 = vunpack.c.l.b16 %v455
        %v659 = vunpack.c.l.b16 %v456
        %v660 = vunpack.c.l.b16 %v457
        %v661 = vunpack.c.l.b16 %v458
        %v662 = vunpack.c.l.b16 %v459
        %v663 = vunpack.c.l.b16 %v460
        %v664 = vunpack.c.l.b16 %v461
        %v665 = vunpack.c.l.b16 %v462
        %v666 = vunpack.c.l.b16 %v463
        %v667 = vunpack.c.l.b16 %v464
        %v668 = vunpack.c.l.b16 %v465
        %v669 = vunpack.c.l.b16 %v466
        %v670 = vunpack.c.l.b16 %v467
        %v671 = vunpack.c.l.b16 %v468
        %v672 = vunpack.c.l.b16 %v469
        %v673 = vunpack.c.l.b16 %v470
        %v674 = vunpack.c.l.b16 %v471
        %v675 = vunpack.c.l.b16 %v472
        %v676 = vunpack.c.l.b16 %v473
        %v677 = vunpack.c.l.b16 %v474
        %v678 = vunpack.c.l.b16 %v475
        %v679 = vunpack.c.l.b16 %v476
        %v680 = vpack.c.b16 %v583, %v582
        %v681 = vpack.c.b16 %v585, %v584
        %v682 = vpack.c.b16 %v587, %v586
        %v683 = vpack.c.b16 %v589, %v588
        %v684 = vpack.c.b16 %v591, %v590
        %v685 = vpack.c.b16 %v593, %v592
        %v686 = vpack.c.b16 %v595, %v594
        %v687 = vpack.c.b16 %v597, %v596
        %v688 = vpack.c.b16 %v599, %v598
        %v689 = vpack.c.b16 %v601, %v600
        %v690 = vpack.c.b16 %v603, %v602
        %v691 = vpack.c.b16 %v605, %v604
        %v692 = vpack.c.b16 %v607, %v606
        %v693 = vpack.c.b16 %v609, %v608
        %v694 = vpack.c.b16 %v611, %v610
        %v695 = vpack.c.b16 %v613, %v612
        %v696 = vpack.c.b16 %v615, %v614
        %v697 = vpack.c.b16 %v617, %v616
        %v698 = vpack.c.b16 %v619, %v618
        %v699 = vpack.c.b16 %v621, %v620
        %v700 = vpack.c.b16 %v623, %v622
        %v701 = vpack.c.b16 %v625, %v624
        %v702 = vpack.c.b16 %v627, %v626
        %v703 = vpack.c.b16 %v629, %v628
        %v704 = vpack.c.b16 %v631, %v630
        %v705 = vpack.c.b16 %v633, %v632
        %v706 = vpack.c.b16 %v635, %v634
        %v707 = vpack.c.b16 %v637, %v636
        %v708 = vpack.c.b16 %v639, %v638
        %v709 = vpack.c.b16 %v641, %v640
        %v710 = vpack.c.b16 %v643, %v642
        %v711 = vpack.c.b16 %v645, %v644
        %v712 = vpack.c.b16 %v647, %v646
        %v713 = vpack.c.b16 %v649, %v648
        %v714 = vpack.c.b16 %v651, %v650
        %v715 = vpack.c.b16 %v653, %v652
        %v716 = vpack.c.b16 %v655, %v654
        %v717 = vpack.c.b16 %v657, %v656
        %v718 = vpack.c.b16 %v659, %v658
        %v719 = vpack.c.b16 %v661, %v660
        %v720 = vpack.c.b16 %v663, %v662
        %v721 = vpack.c.b16 %v665, %v664
        %v722 = vpack.c.b16 %v667, %v666
        %v723 = vpack.c.b16 %v669, %v668
        %v724 = vpack.c.b16 %v671, %v670
        %v725 = vpack.c.b16 %v673, %v672
        %v726 = vpack.c.b16 %v675, %v674
        %v727 = vpack.c.b16 %v677, %v676
        %v728 = vpack.c.b16 %v679, %v678
        %vm778 = vcmask 130048
        %v780 = vsel %vm778, %v378, 0
        %782 = vmatprep.subr.bf16.mxu0 0
        %783 = vmatpush1.bf16.msra.mxu0 %v680
        %784 = vmatprep.subr.bf16.mxu0 0
        %785 = vmatpush1.bf16.msra.mxu0 %v681
        %786 = vmatprep.subr.bf16.mxu0 0
        %787 = vmatpush1.bf16.msra.mxu0 %v682
        %788 = vmatprep.subr.bf16.mxu0 0
        %789 = vmatpush1.bf16.msra.mxu0 %v683
        %790 = vmatprep.subr.bf16.mxu0 0
        %791 = vmatpush1.bf16.msra.mxu0 %v684
        %792 = vmatprep.subr.bf16.mxu0 0
        %793 = vmatpush1.bf16.msra.mxu0 %v685
        %794 = vmatprep.subr.bf16.mxu0 0
        %795 = vmatpush1.bf16.msra.mxu0 %v686
        %796 = vmatprep.subr.bf16.mxu0 0
        %797 = vmatpush1.bf16.msra.mxu0 %v687
        %798 = vmatprep.subr.bf16.mxu0 0
        %799 = vmatpush1.bf16.msra.mxu0 %v688
        %800 = vmatprep.subr.bf16.mxu0 0
        %801 = vmatpush1.bf16.msra.mxu0 %v689
        %802 = vmatprep.subr.bf16.mxu0 0
        %803 = vmatpush1.bf16.msra.mxu0 %v690
        %804 = vmatprep.subr.bf16.mxu0 0
        %805 = vmatpush1.bf16.msra.mxu0 %v691
        %806 = vmatprep.subr.bf16.mxu0 0
        %807 = vmatpush1.bf16.msra.mxu0 %v692
        %808 = vmatprep.subr.bf16.mxu0 0
        %809 = vmatpush1.bf16.msra.mxu0 %v693
        %810 = vmatprep.subr.bf16.mxu0 0
        %811 = vmatpush1.bf16.msra.mxu0 %v694
        %812 = vmatprep.subr.bf16.mxu0 0
        %813 = vmatpush1.bf16.msra.mxu0 %v695
        %814 = vmatprep.mubr.bf16.mxu0 %v373
        %815 = vmatmul.mubr.bf16.gmra.mrb[0].mxu0 %v372
        %v816 = vpop.f32.mrb[0].mxu0
        %v817 = vadd.f32 %v482, %v816
        %v818 = vpop.f32.mrb[0].mxu0
        %v819 = vpop.f32.mrb[0].mxu0
        %v820 = vpop.f32.mrb[0].mxu0
        %821 = vdwg.mxu0
        %822 = vmatprep.subr.bf16.mxu0 0
        %823 = vmatpush1.bf16.msra.mxu0 %v696
        %824 = vmatprep.subr.bf16.mxu0 0
        %825 = vmatpush1.bf16.msra.mxu0 %v697
        %826 = vmatprep.subr.bf16.mxu0 0
        %827 = vmatpush1.bf16.msra.mxu0 %v698
        %828 = vmatprep.subr.bf16.mxu0 0
        %829 = vmatpush1.bf16.msra.mxu0 %v699
        %830 = vmatprep.subr.bf16.mxu0 0
        %831 = vmatpush1.bf16.msra.mxu0 %v700
        %832 = vmatprep.subr.bf16.mxu0 0
        %833 = vmatpush1.bf16.msra.mxu0 %v701
        %834 = vmatprep.subr.bf16.mxu0 0
        %835 = vmatpush1.bf16.msra.mxu0 %v702
        %836 = vmatprep.subr.bf16.mxu0 0
        %837 = vmatpush1.bf16.msra.mxu0 %v703
        %838 = vmatprep.subr.bf16.mxu0 0
        %839 = vmatpush1.bf16.msra.mxu0 %v704
        %840 = vmatprep.subr.bf16.mxu0 0
        %841 = vmatpush1.bf16.msra.mxu0 %v705
        %842 = vmatprep.subr.bf16.mxu0 0
        %843 = vmatpush1.bf16.msra.mxu0 %v706
        %844 = vmatprep.subr.bf16.mxu0 0
        %845 = vmatpush1.bf16.msra.mxu0 %v707
        %846 = vmatprep.subr.bf16.mxu0 0
        %847 = vmatpush1.bf16.msra.mxu0 %v708
        %848 = vmatprep.subr.bf16.mxu0 0
        %849 = vmatpush1.bf16.msra.mxu0 %v709
        %850 = vmatprep.subr.bf16.mxu0 0
        %851 = vmatpush1.bf16.msra.mxu0 %v710
        %852 = vmatprep.subr.bf16.mxu0 0
        %853 = vmatpush1.bf16.msra.mxu0 %v711
        %854 = vmatprep.mubr.bf16.mxu0 %v375
        %855 = vmatmul.mubr.bf16.gmra.mrb[0].mxu0 %v374
        %v856 = vpop.f32.mrb[0].mxu0
        %v857 = vadd.f32 %v817, %v856
        %v858 = vpop.f32.mrb[0].mxu0
        %v859 = vpop.f32.mrb[0].mxu0
        %v860 = vpop.f32.mrb[0].mxu0
        %861 = vdwg.mxu0
        %862 = vmatprep.subr.bf16.mxu0 0
        %863 = vmatpush1.bf16.msra.mxu0 %v712
        %864 = vmatprep.subr.bf16.mxu0 0
        %865 = vmatpush1.bf16.msra.mxu0 %v713
        %866 = vmatprep.subr.bf16.mxu0 0
        %867 = vmatpush1.bf16.msra.mxu0 %v714
        %868 = vmatprep.subr.bf16.mxu0 0
        %869 = vmatpush1.bf16.msra.mxu0 %v715
        %870 = vmatprep.subr.bf16.mxu0 0
        %871 = vmatpush1.bf16.msra.mxu0 %v716
        %872 = vmatprep.subr.bf16.mxu0 0
        %873 = vmatpush1.bf16.msra.mxu0 %v717
        %874 = vmatprep.subr.bf16.mxu0 0
        %875 = vmatpush1.bf16.msra.mxu0 %v718
        %876 = vmatprep.subr.bf16.mxu0 0
        %877 = vmatpush1.bf16.msra.mxu0 %v719
        %878 = vmatprep.subr.bf16.mxu0 0
        %879 = vmatpush1.bf16.msra.mxu0 %v720
        %880 = vmatprep.subr.bf16.mxu0 0
        %881 = vmatpush1.bf16.msra.mxu0 %v721
        %882 = vmatprep.subr.bf16.mxu0 0
        %883 = vmatpush1.bf16.msra.mxu0 %v722
        %884 = vmatprep.subr.bf16.mxu0 0
        %885 = vmatpush1.bf16.msra.mxu0 %v723
        %886 = vmatprep.subr.bf16.mxu0 0
        %887 = vmatpush1.bf16.msra.mxu0 %v724
        %888 = vmatprep.subr.bf16.mxu0 0
        %889 = vmatpush1.bf16.msra.mxu0 %v725
        %890 = vmatprep.subr.bf16.mxu0 0
        %891 = vmatpush1.bf16.msra.mxu0 %v726
        %892 = vmatprep.subr.bf16.mxu0 0
        %893 = vmatpush1.bf16.msra.mxu0 %v727
        %894 = vmatprep.mubr.bf16.mxu0 %v377
        %895 = vmatmul.mubr.bf16.gmra.mrb[0].mxu0 %v376
        %v896 = vpop.f32.mrb[0].mxu0
        %v897 = vadd.f32 %v857, %v896
        %v898 = vpop.f32.mrb[0].mxu0
        %v899 = vpop.f32.mrb[0].mxu0
        %v900 = vpop.f32.mrb[0].mxu0
        %901 = vdwg.mxu0
        %902 = vmatprep.subr.bf16.mxu0 0
        %903 = vmatpush1.bf16.msra.mxu0 %v728
        %904 = vmatprep.subr.bf16.mxu0 0
        %905 = vmatpush1.bf16.msra.mxu0 0
        %906 = vmatprep.subr.bf16.mxu0 0
        %907 = vmatpush1.bf16.msra.mxu0 0
        %908 = vmatprep.subr.bf16.mxu0 0
        %909 = vmatpush1.bf16.msra.mxu0 0
        %910 = vmatprep.subr.bf16.mxu0 0
        %911 = vmatpush1.bf16.msra.mxu0 0
        %912 = vmatprep.subr.bf16.mxu0 0
        %913 = vmatpush1.bf16.msra.mxu0 0
        %914 = vmatprep.subr.bf16.mxu0 0
        %915 = vmatpush1.bf16.msra.mxu0 0
        %916 = vmatprep.subr.bf16.mxu0 0
        %917 = vmatpush1.bf16.msra.mxu0 0
        %918 = vmatprep.subr.bf16.mxu0 0
        %919 = vmatpush1.bf16.msra.mxu0 0
        %920 = vmatprep.subr.bf16.mxu0 0
        %921 = vmatpush1.bf16.msra.mxu0 0
        %922 = vmatprep.subr.bf16.mxu0 0
        %923 = vmatpush1.bf16.msra.mxu0 0
        %924 = vmatprep.subr.bf16.mxu0 0
        %925 = vmatpush1.bf16.msra.mxu0 0
        %926 = vmatprep.subr.bf16.mxu0 0
        %927 = vmatpush1.bf16.msra.mxu0 0
        %928 = vmatprep.subr.bf16.mxu0 0
        %929 = vmatpush1.bf16.msra.mxu0 0
        %930 = vmatprep.subr.bf16.mxu0 0
        %931 = vmatpush1.bf16.msra.mxu0 0
        %932 = vmatprep.subr.bf16.mxu0 0
        %933 = vmatpush1.bf16.msra.mxu0 0
        %934 = vmatprep.mubr.bf16.mxu0 0
        %935 = vmatmul.mubr.bf16.gmra.mrb[0].mxu0 %v780
        %v936 = vpop.f32.mrb[0].mxu0
        %v937 = vadd.f32 %v897, %v936
        %v938 = vpop.f32.mrb[0].mxu0
        %v939 = vpop.f32.mrb[0].mxu0
        %v940 = vpop.f32.mrb[0].mxu0
        %941 = vdwg.mxu0
        %v942 = vmax.f32 %v937, 0.0
        %v943 = vpack.c.bf16 %v942, %v942
        %v944 = vld [vmem:[%s3] sm:$0xf]
        %v945 = vld [vmem:[%s3 + $0x4] sm:$0xf]
        %v946 = vld [vmem:[%s3 + $0x8] sm:$0xf]
        %v947 = vld [vmem:[%s3 + $0xc] sm:$0xf]
        %v948 = vld [vmem:[%s3 + $0x10] sm:$0xf]
        %v949 = vld [vmem:[%s3 + $0x14] sm:$0xf]
        %v950 = vld [vmem:[%s3 + $0x18] sm:$0xf]
        %v951 = vld [vmem:[%s3 + $0x1c] sm:$0xf]
        %v952 = vld [vmem:[%s3 + $0x20] sm:$0xf]
        %v953 = vld [vmem:[%s3 + $0x24] sm:$0xf]
        %v954 = vld [vmem:[%s3 + $0x28] sm:$0xf]
        %v955 = vld [vmem:[%s3 + $0x2c] sm:$0xf]
        %v956 = vld [vmem:[%s3 + $0x30] sm:$0xf]
        %v957 = vld [vmem:[%s3 + $0x34] sm:$0xf]
        %v958 = vld [vmem:[%s3 + $0x38] sm:$0xf]
        %v959 = vld [vmem:[%s3 + $0x3c] sm:$0xf]
        %v960 = vld [vmem:[%s4] sm:$0x1]
        %v962 = vlaneseq
        %v963 = vshrl.u32 %v962, 7
        %v964 = vsub.s32 0, %v963
        %v965 = vrot.slane %v960, %v964
        %v983 = vunpack.c.l.b16 %v944
        %v984 = vunpack.c.l.b16 %v945
        %v985 = vunpack.c.l.b16 %v946
        %v986 = vunpack.c.l.b16 %v947
        %v987 = vunpack.c.l.b16 %v948
        %v988 = vunpack.c.l.b16 %v949
        %v989 = vunpack.c.l.b16 %v950
        %v990 = vunpack.c.l.b16 %v951
        %v991 = vunpack.c.l.b16 %v952
        %v992 = vunpack.c.l.b16 %v953
        %v993 = vunpack.c.l.b16 %v954
        %v994 = vunpack.c.l.b16 %v955
        %v995 = vunpack.c.l.b16 %v956
        %v996 = vunpack.c.l.b16 %v957
        %v997 = vunpack.c.l.b16 %v958
        %v998 = vunpack.c.l.b16 %v959
        %v999 = vpack.c.b16 %v984, %v983
        %v1000 = vpack.c.b16 %v986, %v985
        %v1001 = vpack.c.b16 %v988, %v987
        %v1002 = vpack.c.b16 %v990, %v989
        %v1003 = vpack.c.b16 %v992, %v991
        %v1004 = vpack.c.b16 %v994, %v993
        %v1005 = vpack.c.b16 %v996, %v995
        %v1006 = vpack.c.b16 %v998, %v997
        %1015 = vmatprep.subr.bf16.mxu0 0
        %1016 = vmatpush1.bf16.msra.mxu0 %v999
        %1017 = vmatprep.subr.bf16.mxu0 0
        %1018 = vmatpush1.bf16.msra.mxu0 %v1000
        %1019 = vmatprep.subr.bf16.mxu0 0
        %1020 = vmatpush1.bf16.msra.mxu0 %v1001
        %1021 = vmatprep.subr.bf16.mxu0 0
        %1022 = vmatpush1.bf16.msra.mxu0 %v1002
        %1023 = vmatprep.subr.bf16.mxu0 0
        %1024 = vmatpush1.bf16.msra.mxu0 %v1003
        %1025 = vmatprep.subr.bf16.mxu0 0
        %1026 = vmatpush1.bf16.msra.mxu0 %v1004
        %1027 = vmatprep.subr.bf16.mxu0 0
        %1028 = vmatpush1.bf16.msra.mxu0 %v1005
        %1029 = vmatprep.subr.bf16.mxu0 0
        %1030 = vmatpush1.bf16.msra.mxu0 %v1006
        %1031 = vmatprep.subr.bf16.mxu0 0
        %1032 = vmatpush1.bf16.msra.mxu0 0
        %1033 = vmatprep.subr.bf16.mxu0 0
        %1034 = vmatpush1.bf16.msra.mxu0 0
        %1035 = vmatprep.subr.bf16.mxu0 0
        %1036 = vmatpush1.bf16.msra.mxu0 0
        %1037 = vmatprep.subr.bf16.mxu0 0
        %1038 = vmatpush1.bf16.msra.mxu0 0
        %1039 = vmatprep.subr.bf16.mxu0 0
        %1040 = vmatpush1.bf16.msra.mxu0 0
        %1041 = vmatprep.subr.bf16.mxu0 0
        %1042 = vmatpush1.bf16.msra.mxu0 0
        %1043 = vmatprep.subr.bf16.mxu0 0
        %1044 = vmatpush1.bf16.msra.mxu0 0
        %1045 = vmatprep.subr.bf16.mxu0 0
        %1046 = vmatpush1.bf16.msra.mxu0 0
        %1047 = vmatprep.mubr.bf16.mxu0 0
        %1048 = vmatmul.mubr.bf16.gmra.mrb[0].mxu0 %v943
        %v1049 = vpop.f32.mrb[0].mxu0
        %v1050 = vadd.f32 %v965, %v1049
        %v1051 = vpop.f32.mrb[0].mxu0
        %v1052 = vpop.f32.mrb[0].mxu0
        %v1053 = vpop.f32.mrb[0].mxu0
        %1054 = vdwg.mxu0
        %v1055 = vmax.f32 %v1050, 0.0
        %v1056 = vpack.c.bf16 %v1055, %v1055
        %v1057 = vld [vmem:[%s5] sm:$0xf]
        %v1058 = vld [vmem:[%s5 + $0x4] sm:$0xf]
        %v1059 = vld [vmem:[%s5 + $0x8] sm:$0xf]
        %v1060 = vld [vmem:[%s5 + $0xc] sm:$0xf]
        %v1061 = vld [vmem:[%s5 + $0x10] sm:$0xf]
        %v1062 = vld [vmem:[%s5 + $0x14] sm:$0xf]
        %v1063 = vld [vmem:[%s5 + $0x18] sm:$0xf]
        %v1064 = vld [vmem:[%s5 + $0x1c] sm:$0xf]
        %v1065 = vld [vmem:[%s6] sm:$0x1]
        %v1067 = vlaneseq
        %v1068 = vshrl.u32 %v1067, 7
        %v1069 = vsub.s32 0, %v1068
        %v1070 = vrot.slane %v1065, %v1069
        %v1080 = vunpack.c.l.b16 %v1057
        %v1081 = vunpack.c.l.b16 %v1058
        %v1082 = vunpack.c.l.b16 %v1059
        %v1083 = vunpack.c.l.b16 %v1060
        %v1084 = vunpack.c.l.b16 %v1061
        %v1085 = vunpack.c.l.b16 %v1062
        %v1086 = vunpack.c.l.b16 %v1063
        %v1087 = vunpack.c.l.b16 %v1064
        %v1088 = vpack.c.b16 %v1081, %v1080
        %v1089 = vpack.c.b16 %v1083, %v1082
        %v1090 = vpack.c.b16 %v1085, %v1084
        %v1091 = vpack.c.b16 %v1087, %v1086
        %vm1096 = vcmask 523264
        %v1098 = vsel %vm1096, %v1056, 0
        %1100 = vmatprep.subr.bf16.mxu0 0
        %1101 = vmatpush1.bf16.msra.mxu0 %v1088
        %1102 = vmatprep.subr.bf16.mxu0 0
        %1103 = vmatpush1.bf16.msra.mxu0 %v1089
        %1104 = vmatprep.subr.bf16.mxu0 0
        %1105 = vmatpush1.bf16.msra.mxu0 %v1090
        %1106 = vmatprep.subr.bf16.mxu0 0
        %1107 = vmatpush1.bf16.msra.mxu0 %v1091
        %1108 = vmatprep.subr.bf16.mxu0 0
        %1109 = vmatpush1.bf16.msra.mxu0 0
        %1110 = vmatprep.subr.bf16.mxu0 0
        %1111 = vmatpush1.bf16.msra.mxu0 0
        %1112 = vmatprep.subr.bf16.mxu0 0
        %1113 = vmatpush1.bf16.msra.mxu0 0
        %1114 = vmatprep.subr.bf16.mxu0 0
        %1115 = vmatpush1.bf16.msra.mxu0 0
        %1116 = vmatprep.subr.bf16.mxu0 0
        %1117 = vmatpush1.bf16.msra.mxu0 0
        %1118 = vmatprep.subr.bf16.mxu0 0
        %1119 = vmatpush1.bf16.msra.mxu0 0
        %1120 = vmatprep.subr.bf16.mxu0 0
        %1121 = vmatpush1.bf16.msra.mxu0 0
        %1122 = vmatprep.subr.bf16.mxu0 0
        %1123 = vmatpush1.bf16.msra.mxu0 0
        %1124 = vmatprep.subr.bf16.mxu0 0
        %1125 = vmatpush1.bf16.msra.mxu0 0
        %1126 = vmatprep.subr.bf16.mxu0 0
        %1127 = vmatpush1.bf16.msra.mxu0 0
        %1128 = vmatprep.subr.bf16.mxu0 0
        %1129 = vmatpush1.bf16.msra.mxu0 0
        %1130 = vmatprep.subr.bf16.mxu0 0
        %1131 = vmatpush1.bf16.msra.mxu0 0
        %1132 = vmatprep.mubr.bf16.mxu0 0
        %1133 = vmatmul.mubr.bf16.gmra.mrb[0].mxu0 %v1098
        %v1134 = vpop.f32.mrb[0].mxu0
        %v1135 = vadd.f32 %v1070, %v1134
        %v1136 = vpop.f32.mrb[0].mxu0
        %v1137 = vpop.f32.mrb[0].mxu0
        %v1138 = vpop.f32.mrb[0].mxu0
        %1139 = vdwg.mxu0
        %v1140 = vmax.f32 %v1135, 0.0
        %v1141 = vpack.c.bf16 %v1140, %v1140
        %v1142 = vld [vmem:[%s7] sm:$0xf]
        %v1143 = vld [vmem:[%s7 + $0x4] sm:$0xf]
        %v1144 = vld [vmem:[%s8] sm:$0x1]
        %v1146 = vlaneseq
        %v1147 = vshrl.u32 %v1146, 7
        %v1148 = vsub.s32 0, %v1147
        %v1149 = vrot.slane %v1144, %v1148
        %v1153 = vunpack.c.l.b16 %v1142
        %v1154 = vunpack.c.l.b16 %v1143
        %v1155 = vpack.c.b16 %v1154, %v1153
        %v1158 = vsel %vm778, %v1141, 0
        %1160 = vmatprep.subr.bf16.mxu0 0
        %1161 = vmatpush1.bf16.msra.mxu0 %v1155
        %1162 = vmatprep.subr.bf16.mxu0 0
        %1163 = vmatpush1.bf16.msra.mxu0 0
        %1164 = vmatprep.subr.bf16.mxu0 0
        %1165 = vmatpush1.bf16.msra.mxu0 0
        %1166 = vmatprep.subr.bf16.mxu0 0
        %1167 = vmatpush1.bf16.msra.mxu0 0
        %1168 = vmatprep.subr.bf16.mxu0 0
        %1169 = vmatpush1.bf16.msra.mxu0 0
        %1170 = vmatprep.subr.bf16.mxu0 0
        %1171 = vmatpush1.bf16.msra.mxu0 0
        %1172 = vmatprep.subr.bf16.mxu0 0
        %1173 = vmatpush1.bf16.msra.mxu0 0
        %1174 = vmatprep.subr.bf16.mxu0 0
        %1175 = vmatpush1.bf16.msra.mxu0 0
        %1176 = vmatprep.subr.bf16.mxu0 0
        %1177 = vmatpush1.bf16.msra.mxu0 0
        %1178 = vmatprep.subr.bf16.mxu0 0
        %1179 = vmatpush1.bf16.msra.mxu0 0
        %1180 = vmatprep.subr.bf16.mxu0 0
        %1181 = vmatpush1.bf16.msra.mxu0 0
        %1182 = vmatprep.subr.bf16.mxu0 0
        %1183 = vmatpush1.bf16.msra.mxu0 0
        %1184 = vmatprep.subr.bf16.mxu0 0
        %1185 = vmatpush1.bf16.msra.mxu0 0
        %1186 = vmatprep.subr.bf16.mxu0 0
        %1187 = vmatpush1.bf16.msra.mxu0 0
        %1188 = vmatprep.subr.bf16.mxu0 0
        %1189 = vmatpush1.bf16.msra.mxu0 0
        %1190 = vmatprep.subr.bf16.mxu0 0
        %1191 = vmatpush1.bf16.msra.mxu0 0
        %1192 = vmatprep.mubr.bf16.mxu0 0
        %1193 = vmatmul.mubr.bf16.gmra.mrb[0].mxu0 %v1158
        %v1194 = vpop.f32.mrb[0].mxu0
        %v1195 = vadd.f32 %v1149, %v1194
        %v1196 = vpop.f32.mrb[0].mxu0
        %v1197 = vpop.f32.mrb[0].mxu0
        %v1198 = vpop.f32.mrb[0].mxu0
        %1199 = vdwg.mxu0
        %vm1200 = vcmask 80896
        %1201 = vst.msk [vmem:[%s363] sm:$0xff] %vm1200, %v1195
        %p1202 = scmp.lt.s32.totalorder %s24, 2
        %s1203 = scalar_select %p1202, %s24, 2
        %s1204 = smul.addr %s1203, 8
        %s1205 = scalar_lea.vmem %s9, %s1204
        // Predicated region
        $region65: #{tpu_custom_call.1} parent=55 // pred_check
          %p1206 = pneg %p236
        $region66: #{tpu_custom_call.1} parent=55 // pred_check_branch
          %1208 = sbr.rel (%p1206) target = $region68
        $region67: #{tpu_custom_call.1} parent=55 // pred_region
          _
        $region68: #{tpu_custom_call.1} parent=55 // pred_fallthru
          _
      $region56: #{tpu_custom_call.1} parent=5 // pred_fallthru
        _
      %p1209 = scmp.le.s32.totalorder 2, %s19
      // Predicated region
      $region69: #{tpu_custom_call.1} parent=5 // pred_check
        %p1210 = pneg %p1209
      $region70: #{tpu_custom_call.1} parent=5 // pred_check_branch
        %1212 = sbr.rel (%p1210) target = $region72
      $region71: #{tpu_custom_call.1} parent=5 // pred_region
        %s1213 = ssub.s32 %s19, 2
        // Predicated region
        $region73: #{tpu_custom_call.1} parent=71 // pred_check
          %p1214 = pneg %p242
        $region74: #{tpu_custom_call.1} parent=71 // pred_check_branch
          %1216 = sbr.rel (%p1214) target = $region76
        $region75: #{tpu_custom_call.1} parent=71 // pred_region
          %p1217 = scmp.lt.s32.totalorder %s25, 2
          %s1218 = scalar_select %p1217, %s25, 2
          %s1219 = smul.addr %s1218, 8
          %s1220 = scalar_lea.vmem %s9, %s1219
        $region76: #{tpu_custom_call.1} parent=71 // pred_fallthru
          _
      $region72: #{tpu_custom_call.1} parent=5 // pred_fallthru
        _
    $region6: #{tpu_custom_call.1} parent=1 // loop_footer
      %s23 = sadd.s32 1, %s19
    $region7: #{tpu_custom_call.1} parent=1 // loop_footer_branch
      %18 = sbr.rel target = $region3
    $region8: #{tpu_custom_call.1} parent=1 // loop_exit
      _
    %1221 = vsyncpa [#allocation3], 1
    %s1222 = scalar_lea.sflag [#allocation3], 1
    %1223 = vsyncpa %s1222, 1
    %1224 = vsyncpa [#allocation5], 1

</llo_original>
